<compile_context>
chip_gen: v6e
topology: v6e:2x2x1
jax: 0.10.0
libtpu: 0.0.40
codegen_flags: <defaults>
</compile_context>

<pallas_src>
import jax
import jax.numpy as jnp
from jax.experimental import pallas as pl
from jax.experimental.pallas import tpu as pltpu


def _round_up(n, m):
    return ((n + m - 1) // m) * m


def _zdisc_kernel(x_ref, w1_ref, b1_ref, w2_ref, b2_ref, w3_ref, b3_ref, o_ref):
    # x_ref: (tile_b, zsize) f32 block -> cast to bf16 in VMEM for the MXU.
    x = x_ref[...].astype(jnp.bfloat16)

    # Layer 1 (transposed): h1T = W1 @ x^T  -> (d, tile_b), f32 accumulation.
    # NT contraction (lhs dim 1 with rhs dim 1) avoids any explicit transpose.
    h1 = jax.lax.dot_general(
        w1_ref[...], x,
        dimension_numbers=(((1,), (1,)), ((), ())),
        preferred_element_type=jnp.float32,
    )
    h1 = h1 + b1_ref[...]                       # (d, 1) broadcast over lanes
    h1 = jnp.where(h1 > 0, h1, 0.2 * h1)        # leaky_relu(0.2) in f32

    # Layer 2: h2T = W2 @ h1T -> (d, tile_b).
    h2 = jnp.dot(w2_ref[...], h1.astype(jnp.bfloat16),
                 preferred_element_type=jnp.float32)
    h2 = h2 + b2_ref[...]
    h2 = jnp.where(h2 > 0, h2, 0.2 * h2)

    # Layer 3: logits = W3 @ h2T -> (1, tile_b), lane-dense; sigmoid only on
    # live lanes; 4 B/row HBM writeback.
    h3 = jnp.dot(w3_ref[...], h2.astype(jnp.bfloat16),
                 preferred_element_type=jnp.float32)
    h3 = h3 + b3_ref[...]
    o_ref[...] = jax.nn.sigmoid(h3)


def _choose_tile_b(B, requested):
    if B <= 256:
        return B  # single full-extent block: no edge masking at all
    requested = _round_up(max(requested, 256), 256)
    two_steps = _round_up(pl.cdiv(B, 2), 256)   # keep >=2 grid steps (v7x 2 TCs)
    return min(requested, two_steps)


def zdiscriminator_forward(x, params, tile_b=2048):
    """x: (B, zsize) float32 -> (B, 1) float32."""
    w1, b1, w2, b2, w3, b3 = params
    B, zsize = x.shape
    d = w1.shape[0]

    # bf16 weights for the MXU (tiny, resident); biases stay f32.
    w1b = w1.astype(jnp.bfloat16)
    w2b = w2.astype(jnp.bfloat16)
    w3b = w3.astype(jnp.bfloat16)

    tile_b = _choose_tile_b(B, tile_b)
    grid = (pl.cdiv(B, tile_b),)

    const = lambda i: (0, 0)  # weights/biases stay VMEM-resident across grid

    out = pl.pallas_call(
        _zdisc_kernel,
        out_shape=jax.ShapeDtypeStruct((1, B), jnp.float32),
        grid_spec=pltpu.PrefetchScalarGridSpec(
            num_scalar_prefetch=0,
            grid=grid,
            in_specs=[
                pl.BlockSpec((tile_b, zsize), lambda i: (i, 0)),  # x streamed
                pl.BlockSpec((d, zsize), const),                  # w1 (out, in)
                pl.BlockSpec((d, 1), const),                      # b1 column
                pl.BlockSpec((d, d), const),                      # w2
                pl.BlockSpec((d, 1), const),                      # b2 column
                pl.BlockSpec((1, d), const),                      # w3 row
                pl.BlockSpec((1, 1), const),                      # b3 scalar
            ],
            out_specs=pl.BlockSpec((1, tile_b), lambda i: (0, i)),
        ),
        compiler_params=pltpu.CompilerParams(
            dimension_semantics=("parallel",),
        ),
    )(x, w1b, b1, w2b, b2, w3b, b3)

    # (1, B) -> (B, 1); pure metadata/bitcast-level reshape, no extra HBM pass.
    return out.reshape(B, 1)


def init_params(key, zsize, d, std=0.02):
    """normal_init(mean=0, std): N(0, std) weights, zero bias.

    Weights kept in PyTorch nn.Linear layout (out_features, in_features);
    biases stored as columns (out_features, 1) so the transposed kernel can
    broadcast them across the batch-lane dimension directly.
    """
    k1, k2, k3 = jax.random.split(key, 3)
    w1 = jax.random.normal(k1, (d, zsize), jnp.float32) * std
    b1 = jnp.zeros((d, 1), jnp.float32)
    w2 = jax.random.normal(k2, (d, d), jnp.float32) * std
    b2 = jnp.zeros((d, 1), jnp.float32)
    w3 = jax.random.normal(k3, (1, d), jnp.float32) * std
    b3 = jnp.zeros((1, 1), jnp.float32)
    return (w1, b1, w2, b2, w3, b3)


def _reference_forward(x, params):
    """Pure-JAX f32 reference for correctness check."""
    w1, b1, w2, b2, w3, b3 = params
    h1 = x @ w1.T + b1[:, 0]
    h1 = jnp.where(h1 > 0, h1, 0.2 * h1)
    h2 = h1 @ w2.T + b2[:, 0]
    h2 = jnp.where(h2 > 0, h2, 0.2 * h2)
    return jax.nn.sigmoid(h2 @ w3.T + b3[:, 0])


if __name__ == "__main__":
    zsize = 32   # latent size
    d = 128      # hidden width (default d=128 in the module)

    key = jax.random.PRNGKey(0)
    kx, kp, kb, kx2 = jax.random.split(key, 4)
    params = init_params(kp, zsize, d)

    # normal_init zeroes the biases; give them nonzero values here so the
    # kernel's bias-broadcast path is actually exercised by the self-test.
    kb1, kb2, kb3 = jax.random.split(kb, 3)
    w1, _, w2, _, w3, _ = params
    params = (
        w1, 0.1 * jax.random.normal(kb1, (d, 1), jnp.float32),
        w2, 0.1 * jax.random.normal(kb2, (d, 1), jnp.float32),
        w3, 0.1 * jax.random.normal(kb3, (1, 1), jnp.float32),
    )

    # Small batch: single full-extent block (no edge masking).
    batch = 8
    x = jax.random.normal(kx, (batch, zsize), jnp.float32)
    out = jax.block_until_ready(zdiscriminator_forward(x, params))
    ref = _reference_forward(x, params)
    assert out.shape == (batch, 1), out.shape
    assert jnp.allclose(out, ref, atol=5e-3, rtol=5e-3), "mismatch vs reference (B=8)"

    # Non-multiple batch: 2 grid steps plus a ragged final block (masked store).
    batch2 = 300
    x2 = jax.random.normal(kx2, (batch2, zsize), jnp.float32)
    out2 = jax.block_until_ready(zdiscriminator_forward(x2, params, tile_b=2048))
    ref2 = _reference_forward(x2, params)
    assert out2.shape == (batch2, 1), out2.shape
    assert jnp.allclose(out2, ref2, atol=5e-3, rtol=5e-3), "mismatch vs reference (B=300)"

    print("KERNEL_OK")
</pallas_src>

<mosaic_0001>
module attributes {stable_mosaic.version = 11 : i64} {
  func.func @_zdisc_kernel(%arg0: i32, %arg1: memref<8x32xf32, #tpu.memory_space<vmem>>, %arg2: memref<128x32xbf16, #tpu.memory_space<vmem>>, %arg3: memref<128x1xf32, #tpu.memory_space<vmem>>, %arg4: memref<128x128xbf16, #tpu.memory_space<vmem>>, %arg5: memref<128x1xf32, #tpu.memory_space<vmem>>, %arg6: memref<1x128xbf16, #tpu.memory_space<vmem>>, %arg7: memref<1x1xf32, #tpu.memory_space<vmem>>, %arg8: memref<1x8xf32, #tpu.memory_space<vmem>>) attributes {dimension_semantics = [#tpu.dimension_semantics<parallel>], iteration_bounds = array<i64: 1>, scalar_prefetch = 0 : i64, scratch_operands = 0 : i64, tpu.core_type = #tpu.core_type<tc>, window_params = [{transform_indices = @transform_0, window_bounds = array<i64: 8, 32>}, {pipeline_mode = #tpu.pipeline_mode<synchronous>, transform_indices = @transform_1, window_bounds = array<i64: 128, 32>}, {pipeline_mode = #tpu.pipeline_mode<synchronous>, transform_indices = @transform_2, window_bounds = array<i64: 128, 1>}, {pipeline_mode = #tpu.pipeline_mode<synchronous>, transform_indices = @transform_3, window_bounds = array<i64: 128, 128>}, {pipeline_mode = #tpu.pipeline_mode<synchronous>, transform_indices = @transform_4, window_bounds = array<i64: 128, 1>}, {pipeline_mode = #tpu.pipeline_mode<synchronous>, transform_indices = @transform_5, window_bounds = array<i64: 1, 128>}, {pipeline_mode = #tpu.pipeline_mode<synchronous>, transform_indices = @transform_6, window_bounds = array<i64: 1, 1>}, {transform_indices = @transform_7, window_bounds = array<i64: 1, 8>}]} {
    %c0 = arith.constant 0 : index
    %c0_0 = arith.constant 0 : index
    %0 = vector.load %arg1[%c0, %c0_0] : memref<8x32xf32, #tpu.memory_space<vmem>>, vector<8x32xf32>
    %1 = arith.truncf %0 : vector<8x32xf32> to vector<8x32xbf16>
    %c0_1 = arith.constant 0 : index
    %c0_2 = arith.constant 0 : index
    %2 = vector.load %arg2[%c0_1, %c0_2] : memref<128x32xbf16, #tpu.memory_space<vmem>>, vector<128x32xbf16>
    %cst = arith.constant dense<0.000000e+00> : vector<128x8xf32>
    %3 = tpu.matmul %2, %1, %cst {dimension_numbers = #tpu.dot_dimension_numbers<[1], [1], [0], [0], [0, 0, 1, 0], [], []>} : vector<128x32xbf16>, vector<8x32xbf16>, vector<128x8xf32> -> vector<128x8xf32>
    %c0_3 = arith.constant 0 : index
    %c0_4 = arith.constant 0 : index
    %4 = vector.load %arg3[%c0_3, %c0_4] : memref<128x1xf32, #tpu.memory_space<vmem>>, vector<128x1xf32>
    %5 = vector.broadcast %4 : vector<128x1xf32> to vector<128x8xf32>
    %6 = arith.addf %3, %5 : vector<128x8xf32>
    %cst_5 = arith.constant 0.000000e+00 : f32
    %7 = vector.broadcast %cst_5 : f32 to vector<128x8xf32>
    %8 = arith.cmpf ogt, %6, %7 : vector<128x8xf32>
    %cst_6 = arith.constant 2.000000e-01 : f32
    %9 = vector.broadcast %cst_6 : f32 to vector<128x8xf32>
    %10 = arith.mulf %9, %6 : vector<128x8xf32>
    %11 = arith.select %8, %6, %10 : vector<128x8xi1>, vector<128x8xf32>
    %c0_7 = arith.constant 0 : index
    %c0_8 = arith.constant 0 : index
    %12 = vector.load %arg4[%c0_7, %c0_8] : memref<128x128xbf16, #tpu.memory_space<vmem>>, vector<128x128xbf16>
    %13 = arith.truncf %11 : vector<128x8xf32> to vector<128x8xbf16>
    %cst_9 = arith.constant dense<0.000000e+00> : vector<128x8xf32>
    %14 = tpu.matmul %12, %13, %cst_9 {dimension_numbers = #tpu.dot_dimension_numbers<[1], [0], [0], [1], [0, 0, 1, 1], [], []>} : vector<128x128xbf16>, vector<128x8xbf16>, vector<128x8xf32> -> vector<128x8xf32>
    %c0_10 = arith.constant 0 : index
    %c0_11 = arith.constant 0 : index
    %15 = vector.load %arg5[%c0_10, %c0_11] : memref<128x1xf32, #tpu.memory_space<vmem>>, vector<128x1xf32>
    %16 = vector.broadcast %15 : vector<128x1xf32> to vector<128x8xf32>
    %17 = arith.addf %14, %16 : vector<128x8xf32>
    %cst_12 = arith.constant 0.000000e+00 : f32
    %18 = vector.broadcast %cst_12 : f32 to vector<128x8xf32>
    %19 = arith.cmpf ogt, %17, %18 : vector<128x8xf32>
    %cst_13 = arith.constant 2.000000e-01 : f32
    %20 = vector.broadcast %cst_13 : f32 to vector<128x8xf32>
    %21 = arith.mulf %20, %17 : vector<128x8xf32>
    %22 = arith.select %19, %17, %21 : vector<128x8xi1>, vector<128x8xf32>
    %c0_14 = arith.constant 0 : index
    %c0_15 = arith.constant 0 : index
    %23 = vector.load %arg6[%c0_14, %c0_15] : memref<1x128xbf16, #tpu.memory_space<vmem>>, vector<1x128xbf16>
    %24 = arith.truncf %22 : vector<128x8xf32> to vector<128x8xbf16>
    %cst_16 = arith.constant dense<0.000000e+00> : vector<1x8xf32>
    %25 = tpu.matmul %23, %24, %cst_16 {dimension_numbers = #tpu.dot_dimension_numbers<[1], [0], [0], [1], [0, 0, 1, 1], [], []>} : vector<1x128xbf16>, vector<128x8xbf16>, vector<1x8xf32> -> vector<1x8xf32>
    %c0_17 = arith.constant 0 : index
    %c0_18 = arith.constant 0 : index
    %26 = vector.load %arg7[%c0_17, %c0_18] : memref<1x1xf32, #tpu.memory_space<vmem>>, vector<1x1xf32>
    %27 = vector.broadcast %26 : vector<1x1xf32> to vector<1x8xf32>
    %28 = arith.addf %25, %27 : vector<1x8xf32>
    %29 = arith.negf %28 : vector<1x8xf32>
    %30 = math.exp %29 : vector<1x8xf32>
    %cst_19 = arith.constant 1.000000e+00 : f32
    %31 = vector.broadcast %cst_19 : f32 to vector<1x8xf32>
    %32 = arith.addf %31, %30 : vector<1x8xf32>
    %33 = arith.divf %31, %32 : vector<1x8xf32>
    %c0_20 = arith.constant 0 : index
    %c0_21 = arith.constant 0 : index
    %34 = vector.load %arg8[%c0_20, %c0_21] : memref<1x8xf32, #tpu.memory_space<vmem>>, vector<1x8xf32>
    tpu.vector_store %arg8[%c0_20, %c0_21], %33 {strides = array<i32>} : memref<1x8xf32, #tpu.memory_space<vmem>>, vector<1x8xf32>,
    return
  }
  func.func @transform_0(%arg0: i32) -> (i32, i32) {
    %c0_i32 = arith.constant 0 : i32
    %c0_i32_0 = arith.constant 0 : i32
    return %arg0, %c0_i32 : i32, i32
  }
  func.func @transform_1(%arg0: i32) -> (i32, i32) {
    %c0_i32 = arith.constant 0 : i32
    %c0_i32_0 = arith.constant 0 : i32
    %c0_i32_1 = arith.constant 0 : i32
    return %c0_i32, %c0_i32_0 : i32, i32
  }
  func.func @transform_2(%arg0: i32) -> (i32, i32) {
    %c0_i32 = arith.constant 0 : i32
    %c0_i32_0 = arith.constant 0 : i32
    %c0_i32_1 = arith.constant 0 : i32
    return %c0_i32, %c0_i32_0 : i32, i32
  }
  func.func @transform_3(%arg0: i32) -> (i32, i32) {
    %c0_i32 = arith.constant 0 : i32
    %c0_i32_0 = arith.constant 0 : i32
    %c0_i32_1 = arith.constant 0 : i32
    return %c0_i32, %c0_i32_0 : i32, i32
  }
  func.func @transform_4(%arg0: i32) -> (i32, i32) {
    %c0_i32 = arith.constant 0 : i32
    %c0_i32_0 = arith.constant 0 : i32
    %c0_i32_1 = arith.constant 0 : i32
    return %c0_i32, %c0_i32_0 : i32, i32
  }
  func.func @transform_5(%arg0: i32) -> (i32, i32) {
    %c0_i32 = arith.constant 0 : i32
    %c0_i32_0 = arith.constant 0 : i32
    %c0_i32_1 = arith.constant 0 : i32
    return %c0_i32, %c0_i32_0 : i32, i32
  }
  func.func @transform_6(%arg0: i32) -> (i32, i32) {
    %c0_i32 = arith.constant 0 : i32
    %c0_i32_0 = arith.constant 0 : i32
    %c0_i32_1 = arith.constant 0 : i32
    return %c0_i32, %c0_i32_0 : i32, i32
  }
  func.func @transform_7(%arg0: i32) -> (i32, i32) {
    %c0_i32 = arith.constant 0 : i32
    %c0_i32_0 = arith.constant 0 : i32
    return %c0_i32, %arg0 : i32, i32
  }
}

</mosaic_0001>

<llo_original>
// kernel: tpu_custom_call.1
$region0: #{tpu_custom_call.1}
  #allocation0 [shape = 'u32[]', space=smem, size = 0x4, offset = 0x4, fixed_abs, tag = 'smem constant byte address 0x4 - core index']
  #allocation1 [shape = 'u32[144,128]{1,0:T(1,128)}', space=vmem, size = 0x12000, scoped, tag = 'internal scratch']
  #allocation2 [shape = 'f32[1,1]{1,0:T(1,128)S(1)}', space=vmem, size = 0x200, scoped, tag = 'scoped memory for tpu_custom_call.1']
  %s0 = inlined_call_operand.vmem [shape: f32[8,32], index: 0, kind: input, shape index: {}]
  %s1 = inlined_call_operand.vmem [shape: bf16[128,32], index: 1, kind: input, shape index: {}]
  %s2 = inlined_call_operand.vmem [shape: f32[128,1], index: 2, kind: input, shape index: {}]
  %s3 = inlined_call_operand.vmem [shape: bf16[128,128], index: 3, kind: input, shape index: {}]
  %s4 = inlined_call_operand.vmem [shape: f32[128,1], index: 4, kind: input, shape index: {}]
  %s5 = inlined_call_operand.vmem [shape: bf16[1,128], index: 5, kind: input, shape index: {}]
  %s6 = inlined_call_operand.<no memory space> [shape: f32[1,1], index: 6, kind: input, shape index: {}]
  %s7 = inlined_call_operand.hbm [shape: f32[1,8], index: 7, kind: output, shape index: {}]
  %s8 = sld [smem:[#allocation0]]
  $region38: #{tpu_custom_call.1} parent=0
    _
  %s10 = ssub.s32 1, %s8
  %s11 = scalar_select 0, %s10, %s8
  %v12 = vstv %s6
  %13 = vst [vmem:[#allocation2] sm:$0x1] %v12
  $region1: #{tpu_custom_call.1} parent=0
    #allocation3 [shape = 'u8[512]{0}', space=vmem, size = 0x400, scoped, tag = 'output window, operand 0, single buffered']
    #allocation4 [shape = 's32[1]{0}', space=sflag, size = 0x4, scoped, tag = 'scoped memory for tpu_custom_call.1']
    %14 = vsyncpa [#allocation4], 0
    // Predicated region
    $region2: #{tpu_custom_call.1} parent=1 // pred_check
      _
    $region3: #{tpu_custom_call.1} parent=1 // pred_check_branch
      %16 = sbr.rel (0) target = $region5
    $region4: #{tpu_custom_call.1} parent=1 // pred_region
      _
    $region5: #{tpu_custom_call.1} parent=1 // pred_fallthru
      _
    // Predicated region
    $region6: #{tpu_custom_call.1} parent=1 // pred_check
      _
    $region7: #{tpu_custom_call.1} parent=1 // pred_check_branch
      %18 = sbr.rel (0) target = $region9
    $region8: #{tpu_custom_call.1} parent=1 // pred_region
      _
    $region9: #{tpu_custom_call.1} parent=1 // pred_fallthru
      _
    // Predicated region
    $region10: #{tpu_custom_call.1} parent=1 // pred_check
      _
    $region11: #{tpu_custom_call.1} parent=1 // pred_check_branch
      %20 = sbr.rel (0) target = $region13
    $region12: #{tpu_custom_call.1} parent=1 // pred_region
      _
    $region13: #{tpu_custom_call.1} parent=1 // pred_fallthru
      _
    // Predicated region
    $region14: #{tpu_custom_call.1} parent=1 // pred_check
      _
    $region15: #{tpu_custom_call.1} parent=1 // pred_check_branch
      %22 = sbr.rel (0) target = $region17
    $region16: #{tpu_custom_call.1} parent=1 // pred_region
      _
    $region17: #{tpu_custom_call.1} parent=1 // pred_fallthru
      _
    // Predicated region
    $region18: #{tpu_custom_call.1} parent=1 // pred_check
      _
    $region19: #{tpu_custom_call.1} parent=1 // pred_check_branch
      %24 = sbr.rel (0) target = $region21
    $region20: #{tpu_custom_call.1} parent=1 // pred_region
      _
    $region21: #{tpu_custom_call.1} parent=1 // pred_fallthru
      _
    // Predicated region
    $region22: #{tpu_custom_call.1} parent=1 // pred_check
      _
    $region23: #{tpu_custom_call.1} parent=1 // pred_check_branch
      %26 = sbr.rel (0) target = $region25
    $region24: #{tpu_custom_call.1} parent=1 // pred_region
      _
    $region25: #{tpu_custom_call.1} parent=1 // pred_fallthru
      _
    // Predicated region
    $region26: #{tpu_custom_call.1} parent=1 // pred_check
      _
    $region27: #{tpu_custom_call.1} parent=1 // pred_check_branch
      %28 = sbr.rel (0) target = $region29
    $region28: #{tpu_custom_call.1} parent=1 // pred_region
      _
    $region29: #{tpu_custom_call.1} parent=1 // pred_fallthru
      _
    %v30 = vld [vmem:[%s0] sm:$0xff]
    %v31 = vpack.c.bf16 %v30, %v30
    %v32 = vld [vmem:[%s1] sm:$0xf]
    %v33 = vld [vmem:[%s1 + $0x4] sm:$0xf]
    %v34 = vld [vmem:[%s1 + $0x8] sm:$0xf]
    %v35 = vld [vmem:[%s1 + $0xc] sm:$0xf]
    %v36 = vld [vmem:[%s1 + $0x10] sm:$0xf]
    %v37 = vld [vmem:[%s1 + $0x14] sm:$0xf]
    %v38 = vld [vmem:[%s1 + $0x18] sm:$0xf]
    %v39 = vld [vmem:[%s1 + $0x1c] sm:$0xf]
    %v40 = vld [vmem:[%s1 + $0x20] sm:$0xf]
    %v41 = vld [vmem:[%s1 + $0x24] sm:$0xf]
    %v42 = vld [vmem:[%s1 + $0x28] sm:$0xf]
    %v43 = vld [vmem:[%s1 + $0x2c] sm:$0xf]
    %v44 = vld [vmem:[%s1 + $0x30] sm:$0xf]
    %v45 = vld [vmem:[%s1 + $0x34] sm:$0xf]
    %v46 = vld [vmem:[%s1 + $0x38] sm:$0xf]
    %v47 = vld [vmem:[%s1 + $0x3c] sm:$0xf]
    %v48 = vld [vmem:[%s2] sm:$0xff]
    %v49 = vld [vmem:[%s2 + $0x8] sm:$0xff]
    %v50 = vld [vmem:[%s2 + $0x10] sm:$0xff]
    %v51 = vld [vmem:[%s2 + $0x18] sm:$0xff]
    %v52 = vld [vmem:[%s2 + $0x20] sm:$0xff]
    %v53 = vld [vmem:[%s2 + $0x28] sm:$0xff]
    %v54 = vld [vmem:[%s2 + $0x30] sm:$0xff]
    %v55 = vld [vmem:[%s2 + $0x38] sm:$0xff]
    %v56 = vld [vmem:[%s2 + $0x40] sm:$0xff]
    %v57 = vld [vmem:[%s2 + $0x48] sm:$0xff]
    %v58 = vld [vmem:[%s2 + $0x50] sm:$0xff]
    %v59 = vld [vmem:[%s2 + $0x58] sm:$0xff]
    %v60 = vld [vmem:[%s2 + $0x60] sm:$0xff]
    %v61 = vld [vmem:[%s2 + $0x68] sm:$0xff]
    %v62 = vld [vmem:[%s2 + $0x70] sm:$0xff]
    %v63 = vld [vmem:[%s2 + $0x78] sm:$0xff]
    %65 = vset.pattern.permute.xlu0 0
    %66 = vperm.xlu0 %65, %v48
    %v67 = vpop.permute.xlu0 %66
    %70 = vset.pattern.permute.xlu0 0
    %71 = vperm.xlu0 %70, %v49
    %v72 = vpop.permute.xlu0 %71
    %75 = vset.pattern.permute.xlu0 0
    %76 = vperm.xlu0 %75, %v50
    %v77 = vpop.permute.xlu0 %76
    %80 = vset.pattern.permute.xlu0 0
    %81 = vperm.xlu0 %80, %v51
    %v82 = vpop.permute.xlu0 %81
    %85 = vset.pattern.permute.xlu0 0
    %86 = vperm.xlu0 %85, %v52
    %v87 = vpop.permute.xlu0 %86
    %90 = vset.pattern.permute.xlu0 0
    %91 = vperm.xlu0 %90, %v53
    %v92 = vpop.permute.xlu0 %91
    %95 = vset.pattern.permute.xlu0 0
    %96 = vperm.xlu0 %95, %v54
    %v97 = vpop.permute.xlu0 %96
    %100 = vset.pattern.permute.xlu0 0
    %101 = vperm.xlu0 %100, %v55
    %v102 = vpop.permute.xlu0 %101
    %105 = vset.pattern.permute.xlu0 0
    %106 = vperm.xlu0 %105, %v56
    %v107 = vpop.permute.xlu0 %106
    %110 = vset.pattern.permute.xlu0 0
    %111 = vperm.xlu0 %110, %v57
    %v112 = vpop.permute.xlu0 %111
    %115 = vset.pattern.permute.xlu0 0
    %116 = vperm.xlu0 %115, %v58
    %v117 = vpop.permute.xlu0 %116
    %120 = vset.pattern.permute.xlu0 0
    %121 = vperm.xlu0 %120, %v59
    %v122 = vpop.permute.xlu0 %121
    %125 = vset.pattern.permute.xlu0 0
    %126 = vperm.xlu0 %125, %v60
    %v127 = vpop.permute.xlu0 %126
    %130 = vset.pattern.permute.xlu0 0
    %131 = vperm.xlu0 %130, %v61
    %v132 = vpop.permute.xlu0 %131
    %135 = vset.pattern.permute.xlu0 0
    %136 = vperm.xlu0 %135, %v62
    %v137 = vpop.permute.xlu0 %136
    %140 = vset.pattern.permute.xlu0 0
    %141 = vperm.xlu0 %140, %v63
    %v142 = vpop.permute.xlu0 %141
    %v160 = vunpack.c.l.b16 %v32
    %v161 = vunpack.c.l.b16 %v33
    %v162 = vunpack.c.l.b16 %v34
    %v163 = vunpack.c.l.b16 %v35
    %v164 = vunpack.c.l.b16 %v36
    %v165 = vunpack.c.l.b16 %v37
    %v166 = vunpack.c.l.b16 %v38
    %v167 = vunpack.c.l.b16 %v39
    %v168 = vunpack.c.l.b16 %v40
    %v169 = vunpack.c.l.b16 %v41
    %v170 = vunpack.c.l.b16 %v42
    %v171 = vunpack.c.l.b16 %v43
    %v172 = vunpack.c.l.b16 %v44
    %v173 = vunpack.c.l.b16 %v45
    %v174 = vunpack.c.l.b16 %v46
    %v175 = vunpack.c.l.b16 %v47
    %v176 = vpack.c.b16 %v161, %v160
    %v177 = vpack.c.b16 %v163, %v162
    %v178 = vpack.c.b16 %v165, %v164
    %v179 = vpack.c.b16 %v167, %v166
    %v180 = vpack.c.b16 %v169, %v168
    %v181 = vpack.c.b16 %v171, %v170
    %v182 = vpack.c.b16 %v173, %v172
    %v183 = vpack.c.b16 %v175, %v174
    %vm184 = vcmask 261120
    %v186 = vsel %vm184, %v176, 0
    %v189 = vsel %vm184, %v177, 0
    %v192 = vsel %vm184, %v178, 0
    %v195 = vsel %vm184, %v179, 0
    %v198 = vsel %vm184, %v180, 0
    %v201 = vsel %vm184, %v181, 0
    %v204 = vsel %vm184, %v182, 0
    %v207 = vsel %vm184, %v183, 0
    %v210 = vsel %vm184, %v31, 0
    %212 = vmatprep.subr.bf16.mxu0 0
    %213 = vmatpush1.bf16.xpose.msra.mxu0 0
    %214 = vmatprep.subr.bf16.mxu0 0
    %215 = vmatpush1.bf16.xpose.msra.mxu0 0
    %216 = vmatprep.subr.bf16.mxu0 0
    %217 = vmatpush1.bf16.xpose.msra.mxu0 0
    %218 = vmatprep.subr.bf16.mxu0 0
    %219 = vmatpush1.bf16.xpose.msra.mxu0 0
    %220 = vmatprep.subr.bf16.mxu0 0
    %221 = vmatpush1.bf16.xpose.msra.mxu0 0
    %222 = vmatprep.subr.bf16.mxu0 0
    %223 = vmatpush1.bf16.xpose.msra.mxu0 0
    %224 = vmatprep.subr.bf16.mxu0 0
    %225 = vmatpush1.bf16.xpose.msra.mxu0 0
    %226 = vmatprep.subr.bf16.mxu0 0
    %227 = vmatpush1.bf16.xpose.msra.mxu0 %v210
    %228 = vmatprep.subr.bf16.mxu0 0
    %229 = vmatpush2.bf16.xpose.msra.mxu0 0
    %230 = vmatprep.subr.bf16.mxu0 0
    %231 = vmatpush2.bf16.xpose.msra.mxu0 0
    %232 = vmatprep.subr.bf16.mxu0 0
    %233 = vmatpush2.bf16.xpose.msra.mxu0 0
    %234 = vmatprep.subr.bf16.mxu0 0
    %235 = vmatpush2.bf16.xpose.msra.mxu0 0
    %236 = vmatprep.subr.bf16.mxu0 0
    %237 = vmatpush2.bf16.xpose.msra.mxu0 0
    %238 = vmatprep.subr.bf16.mxu0 0
    %239 = vmatpush2.bf16.xpose.msra.mxu0 0
    %240 = vmatprep.subr.bf16.mxu0 0
    %241 = vmatpush2.bf16.xpose.msra.mxu0 0
    %242 = vmatprep.subr.bf16.mxu0 0
    %243 = vmatpush2.bf16.xpose.msra.mxu0 0
    %244 = vmatprep.mubr.bf16.mxu0 0
    %245 = vmatmul.mubr.bf16.gmra.mxu0 %v186
    %v246 = vpop.f32.mrf.mxu0
    %v247 = vadd.f32 %v67, %v246
    %v248 = vpop.f32.mrf.mxu0
    %v249 = vpop.f32.mrf.mxu0
    %v250 = vadd.f32 %v72, %v249
    %v251 = vpop.f32.mrf.mxu0
    %252 = vmatprep.mubr.bf16.mxu0 0
    %253 = vmatmul.mubr.bf16.gmra.mxu0 %v189
    %v254 = vpop.f32.mrf.mxu0
    %v255 = vadd.f32 %v77, %v254
    %v256 = vpop.f32.mrf.mxu0
    %v257 = vpop.f32.mrf.mxu0
    %v258 = vadd.f32 %v82, %v257
    %v259 = vpop.f32.mrf.mxu0
    %260 = vmatprep.mubr.bf16.mxu0 0
    %261 = vmatmul.mubr.bf16.gmra.mxu0 %v192
    %v262 = vpop.f32.mrf.mxu0
    %v263 = vadd.f32 %v87, %v262
    %v264 = vpop.f32.mrf.mxu0
    %v265 = vpop.f32.mrf.mxu0
    %v266 = vadd.f32 %v92, %v265
    %v267 = vpop.f32.mrf.mxu0
    %268 = vmatprep.mubr.bf16.mxu0 0
    %269 = vmatmul.mubr.bf16.gmra.mxu0 %v195
    %v270 = vpop.f32.mrf.mxu0
    %v271 = vadd.f32 %v97, %v270
    %v272 = vpop.f32.mrf.mxu0
    %v273 = vpop.f32.mrf.mxu0
    %v274 = vadd.f32 %v102, %v273
    %v275 = vpop.f32.mrf.mxu0
    %276 = vmatprep.mubr.bf16.mxu0 0
    %277 = vmatmul.mubr.bf16.gmra.mxu0 %v198
    %v278 = vpop.f32.mrf.mxu0
    %v279 = vadd.f32 %v107, %v278
    %v280 = vpop.f32.mrf.mxu0
    %v281 = vpop.f32.mrf.mxu0
    %v282 = vadd.f32 %v112, %v281
    %v283 = vpop.f32.mrf.mxu0
    %284 = vmatprep.mubr.bf16.mxu0 0
    %285 = vmatmul.mubr.bf16.gmra.mxu0 %v201
    %v286 = vpop.f32.mrf.mxu0
    %v287 = vadd.f32 %v117, %v286
    %v288 = vpop.f32.mrf.mxu0
    %v289 = vpop.f32.mrf.mxu0
    %v290 = vadd.f32 %v122, %v289
    %v291 = vpop.f32.mrf.mxu0
    %292 = vmatprep.mubr.bf16.mxu0 0
    %293 = vmatmul.mubr.bf16.gmra.mxu0 %v204
    %v294 = vpop.f32.mrf.mxu0
    %v295 = vadd.f32 %v127, %v294
    %v296 = vpop.f32.mrf.mxu0
    %v297 = vpop.f32.mrf.mxu0
    %v298 = vadd.f32 %v132, %v297
    %v299 = vpop.f32.mrf.mxu0
    %300 = vmatprep.mubr.bf16.mxu0 0
    %301 = vmatmul.mubr.bf16.gmra.mxu0 %v207
    %v302 = vpop.f32.mrf.mxu0
    %v303 = vadd.f32 %v137, %v302
    %v304 = vpop.f32.mrf.mxu0
    %v305 = vpop.f32.mrf.mxu0
    %v306 = vadd.f32 %v142, %v305
    %v307 = vpop.f32.mrf.mxu0
    %308 = vdwg.mxu0
    %vm309 = vcmp.gt.f32.partialorder %v247, 0.0
    %vm310 = vcmp.gt.f32.partialorder %v250, 0.0
    %vm311 = vcmp.gt.f32.partialorder %v255, 0.0
    %vm312 = vcmp.gt.f32.partialorder %v258, 0.0
    %vm313 = vcmp.gt.f32.partialorder %v263, 0.0
    %vm314 = vcmp.gt.f32.partialorder %v266, 0.0
    %vm315 = vcmp.gt.f32.partialorder %v271, 0.0
    %vm316 = vcmp.gt.f32.partialorder %v274, 0.0
    %vm317 = vcmp.gt.f32.partialorder %v279, 0.0
    %vm318 = vcmp.gt.f32.partialorder %v282, 0.0
    %vm319 = vcmp.gt.f32.partialorder %v287, 0.0
    %vm320 = vcmp.gt.f32.partialorder %v290, 0.0
    %vm321 = vcmp.gt.f32.partialorder %v295, 0.0
    %vm322 = vcmp.gt.f32.partialorder %v298, 0.0
    %vm323 = vcmp.gt.f32.partialorder %v303, 0.0
    %vm324 = vcmp.gt.f32.partialorder %v306, 0.0
    %v325 = vmul.f32 %v247, 0.2
    %v326 = vmul.f32 %v250, 0.2
    %v327 = vmul.f32 %v255, 0.2
    %v328 = vmul.f32 %v258, 0.2
    %v329 = vmul.f32 %v263, 0.2
    %v330 = vmul.f32 %v266, 0.2
    %v331 = vmul.f32 %v271, 0.2
    %v332 = vmul.f32 %v274, 0.2
    %v333 = vmul.f32 %v279, 0.2
    %v334 = vmul.f32 %v282, 0.2
    %v335 = vmul.f32 %v287, 0.2
    %v336 = vmul.f32 %v290, 0.2
    %v337 = vmul.f32 %v295, 0.2
    %v338 = vmul.f32 %v298, 0.2
    %v339 = vmul.f32 %v303, 0.2
    %v340 = vmul.f32 %v306, 0.2
    %v341 = vsel %vm309, %v247, %v325
    %v342 = vsel %vm310, %v250, %v326
    %v343 = vsel %vm311, %v255, %v327
    %v344 = vsel %vm312, %v258, %v328
    %v345 = vsel %vm313, %v263, %v329
    %v346 = vsel %vm314, %v266, %v330
    %v347 = vsel %vm315, %v271, %v331
    %v348 = vsel %vm316, %v274, %v332
    %v349 = vsel %vm317, %v279, %v333
    %v350 = vsel %vm318, %v282, %v334
    %v351 = vsel %vm319, %v287, %v335
    %v352 = vsel %vm320, %v290, %v336
    %v353 = vsel %vm321, %v295, %v337
    %v354 = vsel %vm322, %v298, %v338
    %v355 = vsel %vm323, %v303, %v339
    %v356 = vsel %vm324, %v306, %v340
    %v357 = vld [vmem:[%s3] sm:$0xf]
    %v358 = vld [vmem:[%s3 + $0x4] sm:$0xf]
    %v359 = vld [vmem:[%s3 + $0x8] sm:$0xf]
    %v360 = vld [vmem:[%s3 + $0xc] sm:$0xf]
    %v361 = vld [vmem:[%s3 + $0x10] sm:$0xf]
    %v362 = vld [vmem:[%s3 + $0x14] sm:$0xf]
    %v363 = vld [vmem:[%s3 + $0x18] sm:$0xf]
    %v364 = vld [vmem:[%s3 + $0x1c] sm:$0xf]
    %v365 = vld [vmem:[%s3 + $0x20] sm:$0xf]
    %v366 = vld [vmem:[%s3 + $0x24] sm:$0xf]
    %v367 = vld [vmem:[%s3 + $0x28] sm:$0xf]
    %v368 = vld [vmem:[%s3 + $0x2c] sm:$0xf]
    %v369 = vld [vmem:[%s3 + $0x30] sm:$0xf]
    %v370 = vld [vmem:[%s3 + $0x34] sm:$0xf]
    %v371 = vld [vmem:[%s3 + $0x38] sm:$0xf]
    %v372 = vld [vmem:[%s3 + $0x3c] sm:$0xf]
    %v373 = vpack.c.bf16 %v342, %v341
    %v374 = vpack.c.bf16 %v344, %v343
    %v375 = vpack.c.bf16 %v346, %v345
    %v376 = vpack.c.bf16 %v348, %v347
    %v377 = vpack.c.bf16 %v350, %v349
    %v378 = vpack.c.bf16 %v352, %v351
    %v379 = vpack.c.bf16 %v354, %v353
    %v380 = vpack.c.bf16 %v356, %v355
    %v381 = vld [vmem:[%s4] sm:$0xff]
    %v382 = vld [vmem:[%s4 + $0x8] sm:$0xff]
    %v383 = vld [vmem:[%s4 + $0x10] sm:$0xff]
    %v384 = vld [vmem:[%s4 + $0x18] sm:$0xff]
    %v385 = vld [vmem:[%s4 + $0x20] sm:$0xff]
    %v386 = vld [vmem:[%s4 + $0x28] sm:$0xff]
    %v387 = vld [vmem:[%s4 + $0x30] sm:$0xff]
    %v388 = vld [vmem:[%s4 + $0x38] sm:$0xff]
    %v389 = vld [vmem:[%s4 + $0x40] sm:$0xff]
    %v390 = vld [vmem:[%s4 + $0x48] sm:$0xff]
    %v391 = vld [vmem:[%s4 + $0x50] sm:$0xff]
    %v392 = vld [vmem:[%s4 + $0x58] sm:$0xff]
    %v393 = vld [vmem:[%s4 + $0x60] sm:$0xff]
    %v394 = vld [vmem:[%s4 + $0x68] sm:$0xff]
    %v395 = vld [vmem:[%s4 + $0x70] sm:$0xff]
    %v396 = vld [vmem:[%s4 + $0x78] sm:$0xff]
    %398 = vset.pattern.permute.xlu0 0
    %399 = vperm.xlu0 %398, %v381
    %v400 = vpop.permute.xlu0 %399
    %403 = vset.pattern.permute.xlu0 0
    %404 = vperm.xlu0 %403, %v382
    %v405 = vpop.permute.xlu0 %404
    %408 = vset.pattern.permute.xlu0 0
    %409 = vperm.xlu0 %408, %v383
    %v410 = vpop.permute.xlu0 %409
    %413 = vset.pattern.permute.xlu0 0
    %414 = vperm.xlu0 %413, %v384
    %v415 = vpop.permute.xlu0 %414
    %418 = vset.pattern.permute.xlu0 0
    %419 = vperm.xlu0 %418, %v385
    %v420 = vpop.permute.xlu0 %419
    %423 = vset.pattern.permute.xlu0 0
    %424 = vperm.xlu0 %423, %v386
    %v425 = vpop.permute.xlu0 %424
    %428 = vset.pattern.permute.xlu0 0
    %429 = vperm.xlu0 %428, %v387
    %v430 = vpop.permute.xlu0 %429
    %433 = vset.pattern.permute.xlu0 0
    %434 = vperm.xlu0 %433, %v388
    %v435 = vpop.permute.xlu0 %434
    %438 = vset.pattern.permute.xlu0 0
    %439 = vperm.xlu0 %438, %v389
    %v440 = vpop.permute.xlu0 %439
    %443 = vset.pattern.permute.xlu0 0
    %444 = vperm.xlu0 %443, %v390
    %v445 = vpop.permute.xlu0 %444
    %448 = vset.pattern.permute.xlu0 0
    %449 = vperm.xlu0 %448, %v391
    %v450 = vpop.permute.xlu0 %449
    %453 = vset.pattern.permute.xlu0 0
    %454 = vperm.xlu0 %453, %v392
    %v455 = vpop.permute.xlu0 %454
    %458 = vset.pattern.permute.xlu0 0
    %459 = vperm.xlu0 %458, %v393
    %v460 = vpop.permute.xlu0 %459
    %463 = vset.pattern.permute.xlu0 0
    %464 = vperm.xlu0 %463, %v394
    %v465 = vpop.permute.xlu0 %464
    %468 = vset.pattern.permute.xlu0 0
    %469 = vperm.xlu0 %468, %v395
    %v470 = vpop.permute.xlu0 %469
    %473 = vset.pattern.permute.xlu0 0
    %474 = vperm.xlu0 %473, %v396
    %v475 = vpop.permute.xlu0 %474
    %v493 = vunpack.c.l.b16 %v357
    %v494 = vunpack.c.l.b16 %v358
    %v495 = vunpack.c.l.b16 %v359
    %v496 = vunpack.c.l.b16 %v360
    %v497 = vunpack.c.l.b16 %v361
    %v498 = vunpack.c.l.b16 %v362
    %v499 = vunpack.c.l.b16 %v363
    %v500 = vunpack.c.l.b16 %v364
    %v501 = vunpack.c.l.b16 %v365
    %v502 = vunpack.c.l.b16 %v366
    %v503 = vunpack.c.l.b16 %v367
    %v504 = vunpack.c.l.b16 %v368
    %v505 = vunpack.c.l.b16 %v369
    %v506 = vunpack.c.l.b16 %v370
    %v507 = vunpack.c.l.b16 %v371
    %v508 = vunpack.c.l.b16 %v372
    %v509 = vpack.c.b16 %v494, %v493
    %v510 = vpack.c.b16 %v496, %v495
    %v511 = vpack.c.b16 %v498, %v497
    %v512 = vpack.c.b16 %v500, %v499
    %v513 = vpack.c.b16 %v502, %v501
    %v514 = vpack.c.b16 %v504, %v503
    %v515 = vpack.c.b16 %v506, %v505
    %v516 = vpack.c.b16 %v508, %v507
    %525 = vmatprep.subr.bf16.mxu0 0
    %526 = vmatpush1.bf16.msra.mxu0 %v380
    %527 = vmatprep.subr.bf16.mxu0 0
    %528 = vmatpush1.bf16.msra.mxu0 %v379
    %529 = vmatprep.subr.bf16.mxu0 0
    %530 = vmatpush1.bf16.msra.mxu0 %v378
    %531 = vmatprep.subr.bf16.mxu0 0
    %532 = vmatpush1.bf16.msra.mxu0 %v377
    %533 = vmatprep.subr.bf16.mxu0 0
    %534 = vmatpush1.bf16.msra.mxu0 %v376
    %535 = vmatprep.subr.bf16.mxu0 0
    %536 = vmatpush1.bf16.msra.mxu0 %v375
    %537 = vmatprep.subr.bf16.mxu0 0
    %538 = vmatpush1.bf16.msra.mxu0 %v374
    %539 = vmatprep.subr.bf16.mxu0 0
    %540 = vmatpush1.bf16.msra.mxu0 %v373
    %541 = vmatprep.subr.bf16.mxu0 0
    %542 = vmatpush2.bf16.msra.mxu0 0
    %543 = vmatprep.subr.bf16.mxu0 0
    %544 = vmatpush2.bf16.msra.mxu0 0
    %545 = vmatprep.subr.bf16.mxu0 0
    %546 = vmatpush2.bf16.msra.mxu0 0
    %547 = vmatprep.subr.bf16.mxu0 0
    %548 = vmatpush2.bf16.msra.mxu0 0
    %549 = vmatprep.subr.bf16.mxu0 0
    %550 = vmatpush2.bf16.msra.mxu0 0
    %551 = vmatprep.subr.bf16.mxu0 0
    %552 = vmatpush2.bf16.msra.mxu0 0
    %553 = vmatprep.subr.bf16.mxu0 0
    %554 = vmatpush2.bf16.msra.mxu0 0
    %555 = vmatprep.subr.bf16.mxu0 0
    %556 = vmatpush2.bf16.msra.mxu0 0
    %557 = vmatprep.mubr.bf16.mxu0 0
    %558 = vmatmul.mubr.bf16.gmra.mxu0 %v509
    %v559 = vpop.f32.mrf.mxu0
    %v560 = vadd.f32 %v400, %v559
    %v561 = vpop.f32.mrf.mxu0
    %v562 = vpop.f32.mrf.mxu0
    %v563 = vadd.f32 %v405, %v562
    %v564 = vpop.f32.mrf.mxu0
    %565 = vmatprep.mubr.bf16.mxu0 0
    %566 = vmatmul.mubr.bf16.gmra.mxu0 %v510
    %v567 = vpop.f32.mrf.mxu0
    %v568 = vadd.f32 %v410, %v567
    %v569 = vpop.f32.mrf.mxu0
    %v570 = vpop.f32.mrf.mxu0
    %v571 = vadd.f32 %v415, %v570
    %v572 = vpop.f32.mrf.mxu0
    %573 = vmatprep.mubr.bf16.mxu0 0
    %574 = vmatmul.mubr.bf16.gmra.mxu0 %v511
    %v575 = vpop.f32.mrf.mxu0
    %v576 = vadd.f32 %v420, %v575
    %v577 = vpop.f32.mrf.mxu0
    %v578 = vpop.f32.mrf.mxu0
    %v579 = vadd.f32 %v425, %v578
    %v580 = vpop.f32.mrf.mxu0
    %581 = vmatprep.mubr.bf16.mxu0 0
    %582 = vmatmul.mubr.bf16.gmra.mxu0 %v512
    %v583 = vpop.f32.mrf.mxu0
    %v584 = vadd.f32 %v430, %v583
    %v585 = vpop.f32.mrf.mxu0
    %v586 = vpop.f32.mrf.mxu0
    %v587 = vadd.f32 %v435, %v586
    %v588 = vpop.f32.mrf.mxu0
    %589 = vmatprep.mubr.bf16.mxu0 0
    %590 = vmatmul.mubr.bf16.gmra.mxu0 %v513
    %v591 = vpop.f32.mrf.mxu0
    %v592 = vadd.f32 %v440, %v591
    %v593 = vpop.f32.mrf.mxu0
    %v594 = vpop.f32.mrf.mxu0
    %v595 = vadd.f32 %v445, %v594
    %v596 = vpop.f32.mrf.mxu0
    %597 = vmatprep.mubr.bf16.mxu0 0
    %598 = vmatmul.mubr.bf16.gmra.mxu0 %v514
    %v599 = vpop.f32.mrf.mxu0
    %v600 = vadd.f32 %v450, %v599
    %v601 = vpop.f32.mrf.mxu0
    %v602 = vpop.f32.mrf.mxu0
    %v603 = vadd.f32 %v455, %v602
    %v604 = vpop.f32.mrf.mxu0
    %605 = vmatprep.mubr.bf16.mxu0 0
    %606 = vmatmul.mubr.bf16.gmra.mxu0 %v515
    %v607 = vpop.f32.mrf.mxu0
    %v608 = vadd.f32 %v460, %v607
    %v609 = vpop.f32.mrf.mxu0
    %v610 = vpop.f32.mrf.mxu0
    %v611 = vadd.f32 %v465, %v610
    %v612 = vpop.f32.mrf.mxu0
    %613 = vmatprep.mubr.bf16.mxu0 0
    %614 = vmatmul.mubr.bf16.gmra.mxu0 %v516
    %v615 = vpop.f32.mrf.mxu0
    %v616 = vadd.f32 %v470, %v615
    %v617 = vpop.f32.mrf.mxu0
    %v618 = vpop.f32.mrf.mxu0
    %v619 = vadd.f32 %v475, %v618
    %v620 = vpop.f32.mrf.mxu0
    %621 = vdwg.mxu0
    %vm622 = vcmp.gt.f32.partialorder %v560, 0.0
    %vm623 = vcmp.gt.f32.partialorder %v563, 0.0
    %vm624 = vcmp.gt.f32.partialorder %v568, 0.0
    %vm625 = vcmp.gt.f32.partialorder %v571, 0.0
    %vm626 = vcmp.gt.f32.partialorder %v576, 0.0
    %vm627 = vcmp.gt.f32.partialorder %v579, 0.0
    %vm628 = vcmp.gt.f32.partialorder %v584, 0.0
    %vm629 = vcmp.gt.f32.partialorder %v587, 0.0
    %vm630 = vcmp.gt.f32.partialorder %v592, 0.0
    %vm631 = vcmp.gt.f32.partialorder %v595, 0.0
    %vm632 = vcmp.gt.f32.partialorder %v600, 0.0
    %vm633 = vcmp.gt.f32.partialorder %v603, 0.0
    %vm634 = vcmp.gt.f32.partialorder %v608, 0.0
    %vm635 = vcmp.gt.f32.partialorder %v611, 0.0
    %vm636 = vcmp.gt.f32.partialorder %v616, 0.0
    %vm637 = vcmp.gt.f32.partialorder %v619, 0.0
    %v638 = vmul.f32 %v560, 0.2
    %v639 = vmul.f32 %v563, 0.2
    %v640 = vmul.f32 %v568, 0.2
    %v641 = vmul.f32 %v571, 0.2
    %v642 = vmul.f32 %v576, 0.2
    %v643 = vmul.f32 %v579, 0.2
    %v644 = vmul.f32 %v584, 0.2
    %v645 = vmul.f32 %v587, 0.2
    %v646 = vmul.f32 %v592, 0.2
    %v647 = vmul.f32 %v595, 0.2
    %v648 = vmul.f32 %v600, 0.2
    %v649 = vmul.f32 %v603, 0.2
    %v650 = vmul.f32 %v608, 0.2
    %v651 = vmul.f32 %v611, 0.2
    %v652 = vmul.f32 %v616, 0.2
    %v653 = vmul.f32 %v619, 0.2
    %v654 = vsel %vm622, %v560, %v638
    %v655 = vsel %vm623, %v563, %v639
    %v656 = vsel %vm624, %v568, %v640
    %v657 = vsel %vm625, %v571, %v641
    %v658 = vsel %vm626, %v576, %v642
    %v659 = vsel %vm627, %v579, %v643
    %v660 = vsel %vm628, %v584, %v644
    %v661 = vsel %vm629, %v587, %v645
    %v662 = vsel %vm630, %v592, %v646
    %v663 = vsel %vm631, %v595, %v647
    %v664 = vsel %vm632, %v600, %v648
    %v665 = vsel %vm633, %v603, %v649
    %v666 = vsel %vm634, %v608, %v650
    %v667 = vsel %vm635, %v611, %v651
    %v668 = vsel %vm636, %v616, %v652
    %v669 = vsel %vm637, %v619, %v653
    %v670 = vld [vmem:[%s5] sm:$0x1]
    %v671 = vpack.c.bf16 %v655, %v654
    %v672 = vpack.c.bf16 %v657, %v656
    %v673 = vpack.c.bf16 %v659, %v658
    %v674 = vpack.c.bf16 %v661, %v660
    %v675 = vpack.c.bf16 %v663, %v662
    %v676 = vpack.c.bf16 %v665, %v664
    %v677 = vpack.c.bf16 %v667, %v666
    %v678 = vpack.c.bf16 %v669, %v668
    %v679 = vld [vmem:[#allocation2] sm:$0x1]
    %681 = vset.pattern.permute.xlu0 0
    %682 = vperm.xlu0 %681, %v679
    %v683 = vpop.permute.xlu0 %682
    %v685 = vlaneseq
    %v686 = vshrl.u32 %v685, 7
    %v687 = vsub.s32 0, %v686
    %v688 = vrot.slane %v683, %v687
    %689 = vmatprep.subr.bf16.mxu0 0
    %690 = vmatpush1.bf16.msra.mxu0 %v678
    %691 = vmatprep.subr.bf16.mxu0 0
    %692 = vmatpush1.bf16.msra.mxu0 %v677
    %693 = vmatprep.subr.bf16.mxu0 0
    %694 = vmatpush1.bf16.msra.mxu0 %v676
    %695 = vmatprep.subr.bf16.mxu0 0
    %696 = vmatpush1.bf16.msra.mxu0 %v675
    %697 = vmatprep.subr.bf16.mxu0 0
    %698 = vmatpush1.bf16.msra.mxu0 %v674
    %699 = vmatprep.subr.bf16.mxu0 0
    %700 = vmatpush1.bf16.msra.mxu0 %v673
    %701 = vmatprep.subr.bf16.mxu0 0
    %702 = vmatpush1.bf16.msra.mxu0 %v672
    %703 = vmatprep.subr.bf16.mxu0 0
    %704 = vmatpush1.bf16.msra.mxu0 %v671
    %705 = vmatprep.subr.bf16.mxu0 0
    %706 = vmatpush2.bf16.msra.mxu0 0
    %707 = vmatprep.subr.bf16.mxu0 0
    %708 = vmatpush2.bf16.msra.mxu0 0
    %709 = vmatprep.subr.bf16.mxu0 0
    %710 = vmatpush2.bf16.msra.mxu0 0
    %711 = vmatprep.subr.bf16.mxu0 0
    %712 = vmatpush2.bf16.msra.mxu0 0
    %713 = vmatprep.subr.bf16.mxu0 0
    %714 = vmatpush2.bf16.msra.mxu0 0
    %715 = vmatprep.subr.bf16.mxu0 0
    %716 = vmatpush2.bf16.msra.mxu0 0
    %717 = vmatprep.subr.bf16.mxu0 0
    %718 = vmatpush2.bf16.msra.mxu0 0
    %719 = vmatprep.subr.bf16.mxu0 0
    %720 = vmatpush2.bf16.msra.mxu0 0
    %721 = vmatprep.mubr.bf16.mxu0 0
    %722 = vmatmul.mubr.bf16.gmra.mxu0 %v670
    %v723 = vpop.f32.mrf.mxu0
    %v724 = vadd.f32 %v688, %v723
    %v725 = vpop.f32.mrf.mxu0
    %v726 = vpop.f32.mrf.mxu0
    %v727 = vpop.f32.mrf.mxu0
    %728 = vdwg.mxu0
    %v729 = vxor.u32 %v724, 2147483648
    %v730 = vmul.f32 %v729, 1.442695
    %v731 = vpow.pop %v730
    %v732 = vadd.f32 %v731, 1.0
    %v733 = vrcp.pop %v732
    %v734 = vmul.f32 1.0, %v733
    %vm735 = vcmask 57344
    %736 = vst.msk [vmem:[#allocation3] sm:$0x1] %vm735, %v734
    // Predicated region
    $region30: #{tpu_custom_call.1} parent=1 // pred_check
      _
    $region31: #{tpu_custom_call.1} parent=1 // pred_check_branch
      %738 = sbr.rel (0) target = $region33
    $region32: #{tpu_custom_call.1} parent=1 // pred_region
      %s740 = ssub.s32 16, 16
      %741 = vsyncadd [#allocation4], %s740
      %s743 = sshll.u32 [#allocation3], 4
      %s744 = int_to_ptr.vmem [resolvable:$true] %s743
      %746 = dma.vmem_to_hbm [thread:$0]  %s744, 16, %s7, [#allocation4]
    $region33: #{tpu_custom_call.1} parent=1 // pred_fallthru
      _
    // Predicated region
    $region34: #{tpu_custom_call.1} parent=1 // pred_check
      _
    $region35: #{tpu_custom_call.1} parent=1 // pred_check_branch
      %748 = sbr.rel (0) target = $region37
    $region36: #{tpu_custom_call.1} parent=1 // pred_region
      %749 = dma.done [#allocation4], 16
    $region37: #{tpu_custom_call.1} parent=1 // pred_fallthru
      _
    %750 = vsyncpa [#allocation4], 1

</llo_original>
